<compile_context>
chip_gen: v7x
topology: tpu7x:2x2x1
jax: 0.10.0
libtpu: 0.0.40
codegen_flags: <defaults>
</compile_context>

<pallas_src>
import functools

import jax
import jax.numpy as jnp
from jax.experimental import pallas as pl
from jax.experimental.pallas import tpu as pltpu

_LANE = 128


def _round_up(x, m):
    return ((x + m - 1) // m) * m


def _view_as_real(x):
    """torch.view_as_real: complex -> float32 with a trailing dim of size 2 (re, im)."""
    x = x.astype(jnp.complex64)
    try:
        # Zero-copy reinterpretation (complex64 memory layout is [re, im] float32 pairs).
        return jax.lax.bitcast_convert_type(x, jnp.float32)
    except Exception:
        # Fallback if complex bitcast is unsupported in this JAX version (materializes a copy).
        return jnp.stack([jnp.real(x), jnp.imag(x)], axis=-1)


def _default_num_cores():
    """Use 2 resident accumulator sets only on parts with 2 TensorCores sharing HBM."""
    try:
        kind = jax.devices()[0].device_kind.lower()
    except Exception:
        return 1
    return 2 if any(t in kind for t in ("v4", "v7", "7x")) else 1


@functools.partial(jax.jit, static_argnames=("tile_m", "num_cores"))
def nrmse_loss(y_est, y_ref, *, tile_m: int = 4096, num_cores=None):
    assert y_est.shape == y_ref.shape
    if num_cores is None:
        num_cores = _default_num_cores()

    e = _view_as_real(y_est).reshape(-1)
    r = _view_as_real(y_ref).reshape(-1)
    n = e.shape[0]                       # number of real-view scalars (= 2 * numel(complex))

    n_main = (n // _LANE) * _LANE        # 128-aligned prefix handled by the kernel
    rows = n_main // _LANE

    # Tiny-input / ragged-remainder statistics with plain jnp (at most 127 scalars).
    def _jnp_stats(ev, rv):
        d = ev - rv
        ssd = jnp.sum(d * d)
        rr = rv.reshape(-1, 2)
        mag2 = jnp.sum(rr * rr, axis=-1)
        return ssd, jnp.max(mag2), jnp.min(mag2)

    if rows == 0:                        # input smaller than one 128-lane row
        ssd, mx2, mn2 = _jnp_stats(e, r)
        return (ssd / n) / (jnp.sqrt(mx2) - jnp.sqrt(mn2))

    # NOTE: for ragged n this prefix slice may materialize a copy (no worse than the jnp.pad
    # it replaces); in the common case n % 128 == 0 it is a free contiguous reshape.
    e2 = e[:n_main].reshape(rows, _LANE)
    r2 = r[:n_main].reshape(rows, _LANE)

    # Big streaming tiles (bandwidth-bound), clamped to the data, multiple of 8 sublanes.
    tm = max(8, min(_round_up(tile_m, 8), _round_up(rows, 8)))
    acc_rows = 64 if tm % 64 == 0 else 8          # small resident accumulator height
    groups = tm // acc_rows
    num_blocks = pl.cdiv(rows, tm)
    bpc = pl.cdiv(num_blocks, num_cores)          # blocks per core (parallel split)
    tail_rows = rows - (num_blocks - 1) * tm      # valid rows in the last block
    has_tail = tail_rows != tm

    def kernel(e_ref, r_ref, ssd_ref, mx_ref, mn_ref):
        c = pl.program_id(0)                      # parallel (megacore) index
        i = pl.program_id(1)                      # streaming index within this core
        j = c * bpc + i                           # global block index

        @pl.when(i == 0)
        def _init():
            ssd_ref[...] = jnp.zeros(ssd_ref.shape, jnp.float32)
            mx_ref[...] = jnp.full(mx_ref.shape, -jnp.inf, jnp.float32)
            mn_ref[...] = jnp.full(mn_ref.shape, jnp.inf, jnp.float32)

        def accumulate(n_valid_rows):
            e_t = e_ref[...]
            r_t = r_ref[...]
            d = e_t - r_t
            dd = d * d
            s = r_t * r_t
            # |z|^2 lands on even lanes: lane 2k picks up s[2k] + s[2k+1] via an XLU lane
            # roll (shift = 127 == -1 mod 128).  Odd lanes pair im of one element with re
            # of the next and are neutralized below on the small reduced shape.
            mag2 = s + pltpu.roll(s, shift=_LANE - 1, axis=1)
            if n_valid_rows is not None:          # tail block: mask rows past end of data
                rid = jax.lax.broadcasted_iota(jnp.int32, (tm, 1), 0)
                row_ok = rid < n_valid_rows
                dd = jnp.where(row_ok, dd, 0.0)
                mag2_mx = jnp.where(row_ok, mag2, -jnp.inf)
                mag2_mn = jnp.where(row_ok, mag2, jnp.inf)
            else:
                mag2_mx = mag2
                mag2_mn = mag2
            # In-block reduction over rows: the (tm,128)->(groups,acc_rows,128) reshape is a
            # vreg-aligned sublane split, so the reductions are pure elementwise VALU work.
            ssd_ref[...] += dd.reshape(groups, acc_rows, _LANE).sum(axis=0)
            blk_mx = mag2_mx.reshape(groups, acc_rows, _LANE).max(axis=0)
            blk_mn = mag2_mn.reshape(groups, acc_rows, _LANE).min(axis=0)
            lane = jax.lax.broadcasted_iota(jnp.int32, (acc_rows, _LANE), 1)
            even = (lane & 1) == 0                # odd lanes never hold a valid |z|^2
            mx_ref[...] = jnp.maximum(mx_ref[...], jnp.where(even, blk_mx, -jnp.inf))
            mn_ref[...] = jnp.minimum(mn_ref[...], jnp.where(even, blk_mn, jnp.inf))

        if not has_tail:
            @pl.when(j < num_blocks)              # guards over-provisioned (c, i) iterations
            def _full():
                accumulate(None)
        else:
            @pl.when(j < num_blocks - 1)
            def _full():
                accumulate(None)

            @pl.when(j == num_blocks - 1)         # masked last block (rows past end of data)
            def _tail():
                accumulate(tail_rows)

    def in_map(c, i):
        # Clamp so over-provisioned iterations never DMA out of bounds.
        return (jnp.minimum(c * bpc + i, num_blocks - 1), 0)

    out_shape = (
        jax.ShapeDtypeStruct((num_cores, acc_rows, _LANE), jnp.float32),  # sum((y1 - y2)^2)
        jax.ShapeDtypeStruct((num_cores, acc_rows, _LANE), jnp.float32),  # max |y_ref|^2
        jax.ShapeDtypeStruct((num_cores, acc_rows, _LANE), jnp.float32),  # min |y_ref|^2
    )

    ssd_p, mx_p, mn_p = pl.pallas_call(
        kernel,
        out_shape=out_shape,
        grid_spec=pltpu.PrefetchScalarGridSpec(
            num_scalar_prefetch=0,
            grid=(num_cores, bpc),
            in_specs=[
                pl.BlockSpec((tm, _LANE), in_map),
                pl.BlockSpec((tm, _LANE), in_map),
            ],
            out_specs=[
                pl.BlockSpec((None, acc_rows, _LANE), lambda c, i: (c, 0, 0)),
                pl.BlockSpec((None, acc_rows, _LANE), lambda c, i: (c, 0, 0)),
                pl.BlockSpec((None, acc_rows, _LANE), lambda c, i: (c, 0, 0)),
            ],
        ),
        compiler_params=pltpu.CompilerParams(
            dimension_semantics=("parallel", "arbitrary"),
            vmem_limit_bytes=32 * 1024 * 1024,
        ),
    )(e2, r2)

    # Tiny final reductions + glue (exactly mse_loss / (max|y_ref| - min|y_ref|)).
    total_ssd = jnp.sum(ssd_p)
    mx2 = jnp.max(mx_p)
    mn2 = jnp.min(mn_p)
    if n_main < n:                               # ragged remainder (< 64 complex elements)
        rem_ssd, rem_mx, rem_mn = _jnp_stats(e[n_main:], r[n_main:])
        total_ssd = total_ssd + rem_ssd
        mx2 = jnp.maximum(mx2, rem_mx)
        mn2 = jnp.minimum(mn2, rem_mn)

    mse = total_ssd / n
    # TODO(synk): matches the PyTorch forward exactly — its `eps` is unused, so a
    # constant-magnitude y_ref yields inf/NaN here as well.
    return mse / (jnp.sqrt(mx2) - jnp.sqrt(mn2))


def _reference_loss(y_est, y_ref):
    y1 = jnp.stack([jnp.real(y_est), jnp.imag(y_est)], axis=-1).astype(jnp.float32)
    y2 = jnp.stack([jnp.real(y_ref), jnp.imag(y_ref)], axis=-1).astype(jnp.float32)
    mse = jnp.mean((y1 - y2) ** 2)
    mag = jnp.abs(y_ref)
    return mse / (jnp.max(mag) - jnp.min(mag))


def _random_complex(key, shape):
    k1, k2 = jax.random.split(key)
    return (jax.random.normal(k1, shape, jnp.float32)
            + 1j * jax.random.normal(k2, shape, jnp.float32)).astype(jnp.complex64)


if __name__ == "__main__":
    key = jax.random.PRNGKey(0)
    k1, k2, k3, k4, k5, k6 = jax.random.split(key, 6)

    # Case 1: NCHW complex input, 128-aligned (single block, auto-detected num_cores).
    a1 = _random_complex(k1, (2, 4, 16, 16))
    b1 = _random_complex(k2, (2, 4, 16, 16))
    out1 = jax.block_until_ready(nrmse_loss(a1, b1))
    ref1 = _reference_loss(a1, b1)
    assert jnp.allclose(out1, ref1, rtol=1e-4, atol=1e-6), (out1, ref1)

    # Case 2: ragged size -> wrapper-side remainder + masked tail block, single core.
    a2 = _random_complex(k3, (3, 5, 17, 13))
    b2 = _random_complex(k4, (3, 5, 17, 13))
    out2 = jax.block_until_ready(nrmse_loss(a2, b2, num_cores=1))
    ref2 = _reference_loss(a2, b2)
    assert jnp.allclose(out2, ref2, rtol=1e-4, atol=1e-6), (out2, ref2)

    # Case 3: multi-block streaming on two "cores" with a tail and a guarded idle iteration.
    a3 = _random_complex(k5, (4, 8, 32, 32))
    b3 = _random_complex(k6, (4, 8, 32, 32))
    out3 = jax.block_until_ready(nrmse_loss(a3, b3, tile_m=48, num_cores=2))
    ref3 = _reference_loss(a3, b3)
    assert jnp.allclose(out3, ref3, rtol=1e-4, atol=1e-6), (out3, ref3)

    print("KERNEL_OK")
</pallas_src>

<mosaic_0001>
module attributes {stable_mosaic.version = 11 : i64} {
  func.func @kernel(%arg0: i32, %arg1: i32, %arg2: memref<32x128xf32, #tpu.memory_space<vmem>>, %arg3: memref<32x128xf32, #tpu.memory_space<vmem>>, %arg4: memref<1x8x128xf32, #tpu.memory_space<vmem>>, %arg5: memref<1x8x128xf32, #tpu.memory_space<vmem>>, %arg6: memref<1x8x128xf32, #tpu.memory_space<vmem>>) attributes {dimension_semantics = [#tpu.dimension_semantics<parallel>, #tpu.dimension_semantics<arbitrary>], iteration_bounds = array<i64: 1, 1>, scalar_prefetch = 0 : i64, scratch_operands = 0 : i64, tpu.core_type = #tpu.core_type<tc>, window_params = [{transform_indices = @transform_0, window_bounds = array<i64: 32, 128>}, {transform_indices = @transform_1, window_bounds = array<i64: 32, 128>}, {transform_indices = @transform_2, window_bounds = array<i64: 1, 8, 128>}, {transform_indices = @transform_3, window_bounds = array<i64: 1, 8, 128>}, {transform_indices = @transform_4, window_bounds = array<i64: 1, 8, 128>}]} {
    %c1_i32 = arith.constant 1 : i32
    %0 = arith.muli %arg0, %c1_i32 : i32
    %1 = arith.addi %0, %arg1 : i32
    %c0_i32 = arith.constant 0 : i32
    %2 = arith.cmpi eq, %arg1, %c0_i32 : i32
    %3 = arith.extui %2 : i1 to i32
    %c0_i32_0 = arith.constant 0 : i32
    %4 = arith.cmpi ne, %3, %c0_i32_0 : i32
    scf.if %4 {
      %cst = arith.constant 0.000000e+00 : f32
      %8 = vector.broadcast %cst : f32 to vector<8x128xf32>
      %c0 = arith.constant 0 : index
      %c0_3 = arith.constant 0 : index
      %c0_4 = arith.constant 0 : index
      %9 = vector.load %arg4[%c0, %c0_3, %c0_4] : memref<1x8x128xf32, #tpu.memory_space<vmem>>, vector<1x8x128xf32>
      %10 = vector.shape_cast %9 : vector<1x8x128xf32> to vector<8x128xf32>
      %11 = vector.shape_cast %8 : vector<8x128xf32> to vector<1x8x128xf32>
      tpu.vector_store %arg4[%c0, %c0_3, %c0_4], %11 {strides = array<i32>} : memref<1x8x128xf32, #tpu.memory_space<vmem>>, vector<1x8x128xf32>,
      %cst_5 = arith.constant 0xFF800000 : f32
      %12 = vector.broadcast %cst_5 : f32 to vector<8x128xf32>
      %c0_6 = arith.constant 0 : index
      %c0_7 = arith.constant 0 : index
      %c0_8 = arith.constant 0 : index
      %13 = vector.load %arg5[%c0_6, %c0_7, %c0_8] : memref<1x8x128xf32, #tpu.memory_space<vmem>>, vector<1x8x128xf32>
      %14 = vector.shape_cast %13 : vector<1x8x128xf32> to vector<8x128xf32>
      %15 = vector.shape_cast %12 : vector<8x128xf32> to vector<1x8x128xf32>
      tpu.vector_store %arg5[%c0_6, %c0_7, %c0_8], %15 {strides = array<i32>} : memref<1x8x128xf32, #tpu.memory_space<vmem>>, vector<1x8x128xf32>,
      %cst_9 = arith.constant 0x7F800000 : f32
      %16 = vector.broadcast %cst_9 : f32 to vector<8x128xf32>
      %c0_10 = arith.constant 0 : index
      %c0_11 = arith.constant 0 : index
      %c0_12 = arith.constant 0 : index
      %17 = vector.load %arg6[%c0_10, %c0_11, %c0_12] : memref<1x8x128xf32, #tpu.memory_space<vmem>>, vector<1x8x128xf32>
      %18 = vector.shape_cast %17 : vector<1x8x128xf32> to vector<8x128xf32>
      %19 = vector.shape_cast %16 : vector<8x128xf32> to vector<1x8x128xf32>
      tpu.vector_store %arg6[%c0_10, %c0_11, %c0_12], %19 {strides = array<i32>} : memref<1x8x128xf32, #tpu.memory_space<vmem>>, vector<1x8x128xf32>,
    } else {
    }
    %c1_i32_1 = arith.constant 1 : i32
    %5 = arith.cmpi slt, %1, %c1_i32_1 : i32
    %6 = arith.extui %5 : i1 to i32
    %c0_i32_2 = arith.constant 0 : i32
    %7 = arith.cmpi ne, %6, %c0_i32_2 : i32
    scf.if %7 {
      %c0 = arith.constant 0 : index
      %c0_3 = arith.constant 0 : index
      %8 = vector.load %arg2[%c0, %c0_3] : memref<32x128xf32, #tpu.memory_space<vmem>>, vector<32x128xf32>
      %c0_4 = arith.constant 0 : index
      %c0_5 = arith.constant 0 : index
      %9 = vector.load %arg3[%c0_4, %c0_5] : memref<32x128xf32, #tpu.memory_space<vmem>>, vector<32x128xf32>
      %10 = arith.subf %8, %9 : vector<32x128xf32>
      %11 = arith.mulf %10, %10 : vector<32x128xf32>
      %12 = arith.mulf %9, %9 : vector<32x128xf32>
      %c127_i32 = arith.constant 127 : i32
      %13 = tpu.dynamic_rotate %12 by %c127_i32 dim 1 : vector<32x128xf32>, i32 -> vector<32x128xf32>
      %14 = arith.addf %12, %13 : vector<32x128xf32>
      %c0_6 = arith.constant 0 : index
      %c0_7 = arith.constant 0 : index
      %c0_8 = arith.constant 0 : index
      %15 = vector.load %arg4[%c0_6, %c0_7, %c0_8] : memref<1x8x128xf32, #tpu.memory_space<vmem>>, vector<1x8x128xf32>
      %16 = vector.shape_cast %15 : vector<1x8x128xf32> to vector<8x128xf32>
      %17 = vector.shape_cast %11 : vector<32x128xf32> to vector<4x8x128xf32>
      %cst = arith.constant dense<0.000000e+00> : vector<8x128xf32>
      %18 = vector.multi_reduction <add>, %17, %cst [0] : vector<4x8x128xf32> to vector<8x128xf32>
      %19 = arith.addf %16, %18 : vector<8x128xf32>
      %c0_9 = arith.constant 0 : index
      %c0_10 = arith.constant 0 : index
      %c0_11 = arith.constant 0 : index
      %20 = vector.load %arg4[%c0_9, %c0_10, %c0_11] : memref<1x8x128xf32, #tpu.memory_space<vmem>>, vector<1x8x128xf32>
      %21 = vector.shape_cast %20 : vector<1x8x128xf32> to vector<8x128xf32>
      %22 = vector.shape_cast %19 : vector<8x128xf32> to vector<1x8x128xf32>
      tpu.vector_store %arg4[%c0_9, %c0_10, %c0_11], %22 {strides = array<i32>} : memref<1x8x128xf32, #tpu.memory_space<vmem>>, vector<1x8x128xf32>,
      %23 = vector.shape_cast %14 : vector<32x128xf32> to vector<4x8x128xf32>
      %cst_12 = arith.constant dense<0xFF800000> : vector<8x128xf32>
      %24 = vector.multi_reduction <maximumf>, %23, %cst_12 [0] : vector<4x8x128xf32> to vector<8x128xf32>
      %25 = vector.shape_cast %14 : vector<32x128xf32> to vector<4x8x128xf32>
      %cst_13 = arith.constant dense<0x7F800000> : vector<8x128xf32>
      %26 = vector.multi_reduction <minimumf>, %25, %cst_13 [0] : vector<4x8x128xf32> to vector<8x128xf32>
      %27 = tpu.iota {dimensions = array<i32: 1>} : vector<8x128xi32>
      %c1_i32_14 = arith.constant 1 : i32
      %28 = vector.broadcast %c1_i32_14 : i32 to vector<8x128xi32>
      %29 = arith.andi %27, %28 : vector<8x128xi32>
      %c0_i32_15 = arith.constant 0 : i32
      %30 = vector.broadcast %c0_i32_15 : i32 to vector<8x128xi32>
      %31 = arith.cmpi eq, %29, %30 : vector<8x128xi32>
      %c0_16 = arith.constant 0 : index
      %c0_17 = arith.constant 0 : index
      %c0_18 = arith.constant 0 : index
      %32 = vector.load %arg5[%c0_16, %c0_17, %c0_18] : memref<1x8x128xf32, #tpu.memory_space<vmem>>, vector<1x8x128xf32>
      %33 = vector.shape_cast %32 : vector<1x8x128xf32> to vector<8x128xf32>
      %cst_19 = arith.constant 0xFF800000 : f32
      %34 = vector.broadcast %cst_19 : f32 to vector<8x128xf32>
      %35 = arith.select %31, %24, %34 : vector<8x128xi1>, vector<8x128xf32>
      %36 = arith.maximumf %33, %35 : vector<8x128xf32>
      %c0_20 = arith.constant 0 : index
      %c0_21 = arith.constant 0 : index
      %c0_22 = arith.constant 0 : index
      %37 = vector.load %arg5[%c0_20, %c0_21, %c0_22] : memref<1x8x128xf32, #tpu.memory_space<vmem>>, vector<1x8x128xf32>
      %38 = vector.shape_cast %37 : vector<1x8x128xf32> to vector<8x128xf32>
      %39 = vector.shape_cast %36 : vector<8x128xf32> to vector<1x8x128xf32>
      tpu.vector_store %arg5[%c0_20, %c0_21, %c0_22], %39 {strides = array<i32>} : memref<1x8x128xf32, #tpu.memory_space<vmem>>, vector<1x8x128xf32>,
      %c0_23 = arith.constant 0 : index
      %c0_24 = arith.constant 0 : index
      %c0_25 = arith.constant 0 : index
      %40 = vector.load %arg6[%c0_23, %c0_24, %c0_25] : memref<1x8x128xf32, #tpu.memory_space<vmem>>, vector<1x8x128xf32>
      %41 = vector.shape_cast %40 : vector<1x8x128xf32> to vector<8x128xf32>
      %cst_26 = arith.constant 0x7F800000 : f32
      %42 = vector.broadcast %cst_26 : f32 to vector<8x128xf32>
      %43 = arith.select %31, %26, %42 : vector<8x128xi1>, vector<8x128xf32>
      %44 = arith.minimumf %41, %43 : vector<8x128xf32>
      %c0_27 = arith.constant 0 : index
      %c0_28 = arith.constant 0 : index
      %c0_29 = arith.constant 0 : index
      %45 = vector.load %arg6[%c0_27, %c0_28, %c0_29] : memref<1x8x128xf32, #tpu.memory_space<vmem>>, vector<1x8x128xf32>
      %46 = vector.shape_cast %45 : vector<1x8x128xf32> to vector<8x128xf32>
      %47 = vector.shape_cast %44 : vector<8x128xf32> to vector<1x8x128xf32>
      tpu.vector_store %arg6[%c0_27, %c0_28, %c0_29], %47 {strides = array<i32>} : memref<1x8x128xf32, #tpu.memory_space<vmem>>, vector<1x8x128xf32>,
    } else {
    }
    return
  }
  func.func @transform_0(%arg0: i32, %arg1: i32) -> (i32, i32) {
    %c1_i32 = arith.constant 1 : i32
    %0 = arith.muli %arg0, %c1_i32 : i32
    %1 = arith.addi %0, %arg1 : i32
    %c0_i32 = arith.constant 0 : i32
    %2 = arith.minsi %1, %c0_i32 : i32
    %c0_i32_0 = arith.constant 0 : i32
    %c0_i32_1 = arith.constant 0 : i32
    return %2, %c0_i32_0 : i32, i32
  }
  func.func @transform_1(%arg0: i32, %arg1: i32) -> (i32, i32) {
    %c1_i32 = arith.constant 1 : i32
    %0 = arith.muli %arg0, %c1_i32 : i32
    %1 = arith.addi %0, %arg1 : i32
    %c0_i32 = arith.constant 0 : i32
    %2 = arith.minsi %1, %c0_i32 : i32
    %c0_i32_0 = arith.constant 0 : i32
    %c0_i32_1 = arith.constant 0 : i32
    return %2, %c0_i32_0 : i32, i32
  }
  func.func @transform_2(%arg0: i32, %arg1: i32) -> (i32, i32, i32) {
    %c0_i32 = arith.constant 0 : i32
    %c0_i32_0 = arith.constant 0 : i32
    %c0_i32_1 = arith.constant 0 : i32
    return %arg0, %c0_i32, %c0_i32_0 : i32, i32, i32
  }
  func.func @transform_3(%arg0: i32, %arg1: i32) -> (i32, i32, i32) {
    %c0_i32 = arith.constant 0 : i32
    %c0_i32_0 = arith.constant 0 : i32
    %c0_i32_1 = arith.constant 0 : i32
    return %arg0, %c0_i32, %c0_i32_0 : i32, i32, i32
  }
  func.func @transform_4(%arg0: i32, %arg1: i32) -> (i32, i32, i32) {
    %c0_i32 = arith.constant 0 : i32
    %c0_i32_0 = arith.constant 0 : i32
    %c0_i32_1 = arith.constant 0 : i32
    return %arg0, %c0_i32, %c0_i32_0 : i32, i32, i32
  }
}

</mosaic_0001>

<llo_original>
// kernel: custom-call
$region0: #{custom-call}
  %s0 = inlined_call_operand.hbm [shape: c64[2,4,16,16], index: 0, kind: input, shape index: {}]
  %s1 = inlined_call_operand.vmem [shape: f32[2,4,16,16], index: 1, kind: output, shape index: {}]
  $region1: #{custom-call} parent=0
    #allocation0 [shape = 's32[1]{0}', space=sflag, size = 0x4, scoped, tag = 'scoped memory for custom-call']
    %2 = vsyncpa [#allocation0], 0
    %s3 = sshll.u32 %s1, 4
    %s4 = int_to_ptr.vmem [resolvable:$true] %s3
    %6 = dma.hbm_to_vmem [thread:$0]  %s0, 2048, %s4, [#allocation0]
    %7 = dma.done [#allocation0], 2048
    %8 = vsyncpa [#allocation0], 1

// kernel: custom-call.1
$region0: #{custom-call.1}
  %s0 = inlined_call_operand.hbm [shape: c64[2,4,16,16], index: 0, kind: input, shape index: {}]
  %s1 = inlined_call_operand.vmem [shape: f32[2,4,16,16], index: 1, kind: output, shape index: {}]
  %s2 = scalar_lea.hbm %s0, 2048
  $region1: #{custom-call.1} parent=0
    #allocation0 [shape = 's32[1]{0}', space=sflag, size = 0x4, scoped, tag = 'scoped memory for custom-call.1']
    %3 = vsyncpa [#allocation0], 0
    %s4 = sshll.u32 %s1, 4
    %s5 = int_to_ptr.vmem [resolvable:$true] %s4
    %7 = dma.hbm_to_vmem [thread:$0]  %s2, 2048, %s5, [#allocation0]
    %8 = dma.done [#allocation0], 2048
    %9 = vsyncpa [#allocation0], 1

// kernel: nrmse_loss.1
$region0: #{nrmse_loss.1}
  #allocation0 [shape = 'u32[]', space=smem, size = 0x4, offset = 0x4, fixed_abs, tag = 'smem constant byte address 0x4 - core index']
  #allocation1 [shape = 'u32[144,128]{1,0:T(1,128)}', space=vmem, size = 0x12000, scoped, tag = 'internal scratch']
  %s0 = inlined_call_operand.vmem [shape: f32[32,128], index: 0, kind: input, shape index: {}]
  %s1 = inlined_call_operand.vmem [shape: f32[32,128], index: 1, kind: input, shape index: {}]
  %s2 = inlined_call_operand.vmem [shape: f32[1,8,128], index: 2, kind: output, shape index: {0}]
  %s3 = inlined_call_operand.vmem [shape: f32[1,8,128], index: 3, kind: output, shape index: {1}]
  %s4 = inlined_call_operand.vmem [shape: f32[1,8,128], index: 4, kind: output, shape index: {2}]
  %5 = xla_tuple %s2, %s3, %s4
  %s6 = sld [smem:[#allocation0]]
  $region42: #{nrmse_loss.1} parent=0
    _
  %s8 = ssub.s32 1, %s6
  %s9 = scalar_select 0, %s8, %s6
  // Predicated region
  $region2: #{nrmse_loss.1} parent=0 // pred_check
    _
  $region3: #{nrmse_loss.1} parent=0 // pred_check_branch
    %11 = sbr.rel (0) target = $region5
  $region4: #{nrmse_loss.1} parent=0 // pred_region
    %s12 = sadd.s32 0, 0
    %p13 = scmp.lt.s32.totalorder %s12, 0
    %s14 = scalar_select %p13, %s12, 0
    %s15 = smul.u32 4, %s14
    %p16 = scmp.lt.s32.totalorder %s15, 3
    %s17 = scalar_select %p16, %s15, 3
    %s18 = smul.addr %s17, 8
    %s19 = scalar_lea.vmem %s0, %s18
    %s20 = sadd.s32 0, 0
    %p21 = scmp.lt.s32.totalorder %s20, 0
    %s22 = scalar_select %p21, %s20, 0
    %s23 = smul.u32 4, %s22
  $region5: #{nrmse_loss.1} parent=0 // pred_fallthru
    _
  // Predicated region
  $region6: #{nrmse_loss.1} parent=0 // pred_check
    _
  $region7: #{nrmse_loss.1} parent=0 // pred_check_branch
    %25 = sbr.rel (0) target = $region9
  $region8: #{nrmse_loss.1} parent=0 // pred_region
    %s26 = sadd.s32 0, 0
    %p27 = scmp.lt.s32.totalorder %s26, 0
    %s28 = scalar_select %p27, %s26, 0
    %s29 = smul.u32 4, %s28
    %p30 = scmp.lt.s32.totalorder %s29, 3
    %s31 = scalar_select %p30, %s29, 3
    %s32 = smul.addr %s31, 8
    %s33 = scalar_lea.vmem %s1, %s32
    %s34 = sadd.s32 0, 0
    %p35 = scmp.lt.s32.totalorder %s34, 0
    %s36 = scalar_select %p35, %s34, 0
    %s37 = smul.u32 4, %s36
  $region9: #{nrmse_loss.1} parent=0 // pred_fallthru
    _
  %s38 = sadd.s32 0, 0
  %p39 = scmp.lt.s32.totalorder %s38, 0
  %s40 = scalar_select %p39, %s38, 0
  %s41 = smul.u32 4, %s40
  %p42 = scmp.lt.s32.totalorder %s41, 3
  %s43 = scalar_select %p42, %s41, 3
  %s44 = smul.addr %s43, 8
  %s45 = scalar_lea.vmem %s0, %s44
  %s46 = sadd.s32 0, 0
  %p47 = scmp.lt.s32.totalorder %s46, 0
  %s48 = scalar_select %p47, %s46, 0
  %s49 = smul.u32 4, %s48
  %p50 = scmp.lt.s32.totalorder %s49, 3
  %s51 = scalar_select %p50, %s49, 3
  %s52 = smul.addr %s51, 8
  %s53 = scalar_lea.vmem %s1, %s52
  %s54 = sadd.s32 0, 0
  %p55 = scmp.lt.s32.totalorder %s54, 0
  %s56 = scalar_select %p55, %s54, 0
  %s57 = smul.u32 4, %s56
  %p58 = scmp.lt.s32.totalorder %s57, 3
  %s59 = scalar_select %p58, %s57, 3
  %s60 = smul.addr %s59, 8
  %s61 = scalar_lea.vmem %s0, %s60
  %s62 = sadd.s32 0, 0
  %p63 = scmp.lt.s32.totalorder %s62, 0
  %s64 = scalar_select %p63, %s62, 0
  %s65 = smul.u32 4, %s64
  %s66 = sadd.s32 0, 0
  %p67 = scmp.lt.s32.totalorder %s66, 0
  %s68 = scalar_select %p67, %s66, 0
  %s69 = smul.u32 4, %s68
  %p70 = scmp.lt.s32.totalorder %s69, 3
  %s71 = scalar_select %p70, %s69, 3
  %s72 = smul.addr %s71, 8
  %s73 = scalar_lea.vmem %s1, %s72
  %s74 = sadd.s32 0, 0
  %p75 = scmp.lt.s32.totalorder %s74, 0
  %s76 = scalar_select %p75, %s74, 0
  %s77 = smul.u32 4, %s76
  %s78 = sadd.s32 0, 0
  %p79 = scmp.eq.s32.totalorder 0, 0
  // Predicated region
  $region10: #{nrmse_loss.1} parent=0 // pred_check
    %p80 = pneg %p79
  $region11: #{nrmse_loss.1} parent=0 // pred_check_branch
    %82 = sbr.rel (%p80) target = $region13
  $region12: #{nrmse_loss.1} parent=0 // pred_region
    %83 = vst [vmem:[%s2] sm:$0xff] 0.0
    %84 = vst [vmem:[%s3] sm:$0xff] -inf
    %85 = vst [vmem:[%s4] sm:$0xff] inf
  $region13: #{nrmse_loss.1} parent=0 // pred_fallthru
    _
  %p86 = scmp.lt.s32.totalorder %s78, 1
  // Predicated region
  $region14: #{nrmse_loss.1} parent=0 // pred_check
    %p87 = pneg %p86
  $region15: #{nrmse_loss.1} parent=0 // pred_check_branch
    %89 = sbr.rel (%p87) target = $region17
  $region16: #{nrmse_loss.1} parent=0 // pred_region
    %v90 = vld [vmem:[%s61] sm:$0xff]
    %v91 = vld [vmem:[%s61 + $0x8] sm:$0xff]
    %v92 = vld [vmem:[%s61 + $0x10] sm:$0xff]
    %v93 = vld [vmem:[%s61 + $0x18] sm:$0xff]
    %v94 = vld [vmem:[%s73] sm:$0xff]
    %v95 = vld [vmem:[%s73 + $0x8] sm:$0xff]
    %v96 = vld [vmem:[%s73 + $0x10] sm:$0xff]
    %v97 = vld [vmem:[%s73 + $0x18] sm:$0xff]
    %v98 = vsub.f32 %v90, %v94
    %v99 = vsub.f32 %v91, %v95
    %v100 = vsub.f32 %v92, %v96
    %v101 = vsub.f32 %v93, %v97
    %v102 = vmul.f32 %v98, %v98
    %v103 = vmul.f32 %v99, %v99
    %v104 = vmul.f32 %v100, %v100
    %v105 = vmul.f32 %v101, %v101
    %v106 = vmul.f32 %v94, %v94
    %v107 = vmul.f32 %v95, %v95
    %v108 = vmul.f32 %v96, %v96
    %v109 = vmul.f32 %v97, %v97
    %110 = vrot.lane.b32.xlu0 %v106, 127
    %v111 = vpop.permute.xlu0 %110
    %112 = vrot.lane.b32.xlu0 %v107, 127
    %v113 = vpop.permute.xlu0 %112
    %114 = vrot.lane.b32.xlu0 %v108, 127
    %v115 = vpop.permute.xlu0 %114
    %116 = vrot.lane.b32.xlu0 %v109, 127
    %v117 = vpop.permute.xlu0 %116
    %v118 = vadd.f32 %v106, %v111
    %v119 = vadd.f32 %v107, %v113
    %v120 = vadd.f32 %v108, %v115
    %v121 = vadd.f32 %v109, %v117
    %v122 = vld [vmem:[%s2] sm:$0xff]
    %v123 = vadd.f32 %v102, %v103
    %v124 = vadd.f32 %v123, %v104
    %v125 = vadd.f32 %v124, %v105
    %v126 = vadd.f32 %v122, %v125
    %127 = vst [vmem:[%s2] sm:$0xff] %v126
    %v128 = vmax.f32 %v118, %v119
    %v129 = vmax.f32 %v120, %v121
    %v130 = vmax.f32 %v128, %v129
    %v131 = vmin.f32 %v118, %v119
    %v132 = vmin.f32 %v120, %v121
    %v133 = vmin.f32 %v131, %v132
    %v134 = vlaneseq
    %v135 = vand.u32 %v134, 127
    %v136 = vand.u32 %v135, 1
    %vm137 = vcmp.eq.s32.totalorder %v136, 0
    %v138 = vld [vmem:[%s3] sm:$0xff]
    %v139 = vsel %vm137, %v130, -inf
    %v140 = vmax.f32 %v138, %v139
    %141 = vst [vmem:[%s3] sm:$0xff] %v140
    %v142 = vld [vmem:[%s4] sm:$0xff]
    %v143 = vsel %vm137, %v133, inf
    %v144 = vmin.f32 %v142, %v143
    %145 = vst [vmem:[%s4] sm:$0xff] %v144
  $region17: #{nrmse_loss.1} parent=0 // pred_fallthru
    _
  // Predicated region
  $region18: #{nrmse_loss.1} parent=0 // pred_check
    _
  $region19: #{nrmse_loss.1} parent=0 // pred_check_branch
    %147 = sbr.rel (0) target = $region21
  $region20: #{nrmse_loss.1} parent=0 // pred_region
    _
  $region21: #{nrmse_loss.1} parent=0 // pred_fallthru
    _
  // Predicated region
  $region22: #{nrmse_loss.1} parent=0 // pred_check
    _
  $region23: #{nrmse_loss.1} parent=0 // pred_check_branch
    %149 = sbr.rel (0) target = $region25
  $region24: #{nrmse_loss.1} parent=0 // pred_region
    _
  $region25: #{nrmse_loss.1} parent=0 // pred_fallthru
    _
  // Predicated region
  $region26: #{nrmse_loss.1} parent=0 // pred_check
    _
  $region27: #{nrmse_loss.1} parent=0 // pred_check_branch
    %151 = sbr.rel (0) target = $region29
  $region28: #{nrmse_loss.1} parent=0 // pred_region
    _
  $region29: #{nrmse_loss.1} parent=0 // pred_fallthru
    _
  // Predicated region
  $region30: #{nrmse_loss.1} parent=0 // pred_check
    _
  $region31: #{nrmse_loss.1} parent=0 // pred_check_branch
    %153 = sbr.rel (0) target = $region33
  $region32: #{nrmse_loss.1} parent=0 // pred_region
    _
  $region33: #{nrmse_loss.1} parent=0 // pred_fallthru
    _
  // Predicated region
  $region34: #{nrmse_loss.1} parent=0 // pred_check
    _
  $region35: #{nrmse_loss.1} parent=0 // pred_check_branch
    %155 = sbr.rel (0) target = $region37
  $region36: #{nrmse_loss.1} parent=0 // pred_region
    _
  $region37: #{nrmse_loss.1} parent=0 // pred_fallthru
    _
  // Predicated region
  $region38: #{nrmse_loss.1} parent=0 // pred_check
    _
  $region39: #{nrmse_loss.1} parent=0 // pred_check_branch
    %157 = sbr.rel (0) target = $region41
  $region40: #{nrmse_loss.1} parent=0 // pred_region
    _
  $region41: #{nrmse_loss.1} parent=0 // pred_fallthru
    _

</llo_original>
